<compile_context>
chip_gen: v7x
topology: tpu7x:2x2x1
jax: 0.10.0
libtpu: 0.0.40
codegen_flags: <defaults>
</compile_context>

<pallas_src>
import jax
import jax.numpy as jnp
from jax.experimental import pallas as pl
from jax.experimental.pallas import tpu as pltpu


def _round_up(x, m):
    return ((x + m - 1) // m) * m


# ---------------------------------------------------------------------------
# Small-problem path: single pallas_call, no per-column grid; the column loop
# is statically unrolled inside the kernel (grid-step overhead would dominate
# the tiny per-column matmuls).
# ---------------------------------------------------------------------------
def _fused_kernel(x_ref, w_ref, b_ref, o_ref):
    # x_ref : (R, C*H)     rows-format input, fully resident in VMEM
    # w_ref : (C, H, HO)   per-column weights
    # b_ref : (C, 1, HO)   per-column biases
    # o_ref : (C, R, HO)   columnar output
    num_cols, hidden, _ = w_ref.shape
    x = x_ref[...]
    for c in range(num_cols):          # static unroll: num_cols is compile-time
        # rows -> columnar gather for column c (static, lane-aligned slice)
        x_c = x[:, c * hidden:(c + 1) * hidden]
        y = jnp.dot(x_c, w_ref[c], preferred_element_type=jnp.float32)
        o_ref[c] = (y + b_ref[c]).astype(o_ref.dtype)


# ---------------------------------------------------------------------------
# Production path: grid = (column, row-tile). The x BlockSpec index_map does
# the rows->columnar gather; the weight block is constant over the inner
# row-tile axis; the bias tensor is one tiny resident block.
# ---------------------------------------------------------------------------
def _tiled_kernel(x_ref, w_ref, b_ref, o_ref):
    # x_ref : (tm, H)      column c of a tile of rows (gathered by index_map)
    # w_ref : (H, HO)      this column's weight (leading dim squeezed)
    # b_ref : (C, 1, HO)   all biases, resident
    # o_ref : (tm, HO)     columnar output tile (leading dim squeezed)
    c = pl.program_id(0)
    y = jnp.dot(x_ref[...], w_ref[...], preferred_element_type=jnp.float32)
    o_ref[...] = (y + b_ref[c]).astype(o_ref.dtype)


_FUSED_BYTE_LIMIT = 2 * 1024 * 1024   # switch to the tiled path above this


def rows_to_columnar_transform(x_rows, weights, biases, *, num_cols, hidden,
                               tm=None, mode="auto",
                               out_dtype=jnp.bfloat16):
    """Rows-format -> columnar gather + per-column linear transform.

    x_rows : [R, num_cols*hidden]   rows-format data (any float dtype)
    weights: [num_cols, hidden, hidden_out]
    biases : [num_cols, 1, hidden_out]
    returns: [num_cols, R, hidden_out] columnar output in `out_dtype`.
    """
    num_rows = x_rows.shape[0]
    hidden_out = weights.shape[-1]
    assert x_rows.shape[1] == num_cols * hidden
    assert weights.shape == (num_cols, hidden, hidden_out)
    assert biases.shape == (num_cols, 1, hidden_out)

    # bf16 data everywhere; accumulation stays f32 on the MXU.
    x = x_rows.astype(jnp.bfloat16)
    w = weights.astype(jnp.bfloat16)
    b = biases.astype(jnp.bfloat16)

    total_bytes = 2 * (x.size + w.size + b.size
                       + num_cols * num_rows * hidden_out)
    if mode == "auto":
        mode = "fused" if total_bytes <= _FUSED_BYTE_LIMIT else "tiled"

    if mode == "fused":
        vmem_limit = int(min(32 * 2**20, max(8 * 2**20, 4 * total_bytes)))
        return pl.pallas_call(
            _fused_kernel,
            out_shape=jax.ShapeDtypeStruct((num_cols, num_rows, hidden_out),
                                           out_dtype),
            grid_spec=pltpu.PrefetchScalarGridSpec(
                num_scalar_prefetch=0,
                grid=(1,),
                in_specs=[
                    pl.BlockSpec((num_rows, num_cols * hidden),
                                 lambda i: (0, 0)),
                    pl.BlockSpec((num_cols, hidden, hidden_out),
                                 lambda i: (0, 0, 0)),
                    pl.BlockSpec((num_cols, 1, hidden_out),
                                 lambda i: (0, 0, 0)),
                ],
                out_specs=pl.BlockSpec((num_cols, num_rows, hidden_out),
                                       lambda i: (0, 0, 0)),
            ),
            compiler_params=pltpu.CompilerParams(
                dimension_semantics=("arbitrary",),
                vmem_limit_bytes=vmem_limit),
        )(x, w, b)

    # ------------------------- tiled path -------------------------
    if tm is None:
        tm = min(512, _round_up(num_rows, 16))
    assert tm % 16 == 0, "row tile must be a multiple of 16 for bf16 sublanes"
    num_rows_pad = _round_up(num_rows, tm)
    if num_rows_pad != num_rows:
        x = jnp.pad(x, ((0, num_rows_pad - num_rows), (0, 0)))
    grid = (num_cols, num_rows_pad // tm)

    # Double-buffered working set (+ resident bias), with headroom, clamped so
    # it is valid on v7x's smaller VMEM as well.
    working = (2 * 2 * (tm * hidden + hidden * hidden_out + tm * hidden_out)
               + 2 * num_cols * hidden_out)
    vmem_limit = int(min(32 * 2**20, max(8 * 2**20, 4 * working)))

    out = pl.pallas_call(
        _tiled_kernel,
        out_shape=jax.ShapeDtypeStruct((num_cols, num_rows_pad, hidden_out),
                                       out_dtype),
        grid_spec=pltpu.PrefetchScalarGridSpec(
            num_scalar_prefetch=0,
            grid=grid,
            in_specs=[
                # rows -> columnar gather: for (column c, row-tile r), pull the
                # (tm, hidden) slice holding column c of rows [r*tm, (r+1)*tm).
                pl.BlockSpec((tm, hidden), lambda c, r: (r, c)),
                # this column's weight; block index is constant over the inner
                # row-tile axis, so it is only re-fetched when c changes.
                pl.BlockSpec((None, hidden, hidden_out),
                             lambda c, r: (c, 0, 0)),
                # all biases resident (tiny), indexed by program_id in-kernel.
                pl.BlockSpec((num_cols, 1, hidden_out),
                             lambda c, r: (0, 0, 0)),
            ],
            out_specs=pl.BlockSpec((None, tm, hidden_out),
                                   lambda c, r: (c, r, 0)),
        ),
        compiler_params=pltpu.CompilerParams(
            # both axes independent -> v7x megacore can split them
            dimension_semantics=("parallel", "parallel"),
            vmem_limit_bytes=vmem_limit),
    )(x, w, b)
    if num_rows_pad != num_rows:
        out = out[:, :num_rows, :]
    return out
    # TODO(synk): if `hidden` ever exceeds one K tile, add a trailing
    # "arbitrary" K grid axis with a VMEM f32 accumulator + pl.when
    # init/finalize instead of loading an oversized (tm, hidden) block.


# TODO(synk): arbitrary column payloads (e.g. strings) in List[Dict[str, Any]]
# have no Pallas equivalent; this kernel specializes to fixed numeric columns.


if __name__ == "__main__":
    NUM_ROWS = 8      # tiny batch of rows -> fused single-step path
    NUM_COLS = 4      # columns per row (e.g. "text", "label", ...)
    HIDDEN = 128      # per-column feature width
    HIDDEN_OUT = 128  # wrapped columnar transform's output width

    key = jax.random.PRNGKey(0)
    k_rows, k_w, k_b, k_big = jax.random.split(key, 4)

    # "rows" format: List[Dict[column_name, feature_vector]]
    row_data = jax.random.normal(k_rows, (NUM_ROWS, NUM_COLS, HIDDEN),
                                 dtype=jnp.float32)
    column_names = [f"col{c}" for c in range(NUM_COLS)]
    rows = [{column_names[c]: row_data[r, c] for c in range(NUM_COLS)}
            for r in range(NUM_ROWS)]

    # Glue: pack the rows-format python structure into the rows-layout tensor.
    x_rows = jnp.stack(
        [jnp.concatenate([row[name] for name in column_names]) for row in rows],
        axis=0)                                          # [R, C*H]

    # Deterministic parameters of the wrapped per-column linear transform.
    weights = jax.random.normal(k_w, (NUM_COLS, HIDDEN, HIDDEN_OUT),
                                dtype=jnp.float32) * 0.02
    biases = jax.random.normal(k_b, (NUM_COLS, 1, HIDDEN_OUT),
                               dtype=jnp.float32) * 0.01

    # Pure-JAX reference on the bf16-cast data the kernel actually consumes.
    def reference(x3d, w, bias):
        xc = jnp.transpose(x3d.astype(jnp.bfloat16).astype(jnp.float32),
                           (1, 0, 2))                    # rows -> columnar
        wf = w.astype(jnp.bfloat16).astype(jnp.float32)
        bf = bias.astype(jnp.bfloat16).astype(jnp.float32)
        return jnp.einsum("crh,cho->cro", xc, wf) + bf

    # --- path 1: fused (small problem, no per-column grid) ---
    out = rows_to_columnar_transform(
        x_rows, weights, biases, num_cols=NUM_COLS, hidden=HIDDEN)
    out = jax.block_until_ready(out)
    ref = reference(row_data, weights, biases)
    assert out.shape == (NUM_COLS, NUM_ROWS, HIDDEN_OUT)
    assert out.dtype == jnp.bfloat16
    assert jnp.allclose(out.astype(jnp.float32), ref, atol=2e-2, rtol=2e-2)

    # --- path 2: row-tiled grid (production layout; 200 rows exercises the
    #             row padding and the (column, row-tile) pipeline) ---
    BIG_ROWS = 200
    big_rows = jax.random.normal(k_big, (BIG_ROWS, NUM_COLS, HIDDEN),
                                 dtype=jnp.float32)
    x_big = big_rows.reshape(BIG_ROWS, NUM_COLS * HIDDEN)
    out_big = rows_to_columnar_transform(
        x_big, weights, biases, num_cols=NUM_COLS, hidden=HIDDEN,
        mode="tiled", tm=128)
    out_big = jax.block_until_ready(out_big)
    ref_big = reference(big_rows, weights, biases)
    assert out_big.shape == (NUM_COLS, BIG_ROWS, HIDDEN_OUT)
    assert jnp.allclose(out_big.astype(jnp.float32), ref_big,
                        atol=2e-2, rtol=2e-2)

    print("KERNEL_OK")
</pallas_src>

<mosaic_0001>
module attributes {stable_mosaic.version = 11 : i64} {
  func.func @_fused_kernel(%arg0: i32, %arg1: memref<8x512xbf16, #tpu.memory_space<vmem>>, %arg2: memref<4x128x128xbf16, #tpu.memory_space<vmem>>, %arg3: memref<4x1x128xbf16, #tpu.memory_space<vmem>>, %arg4: memref<4x8x128xbf16, #tpu.memory_space<vmem>>) attributes {dimension_semantics = [#tpu.dimension_semantics<arbitrary>], iteration_bounds = array<i64: 1>, scalar_prefetch = 0 : i64, scratch_operands = 0 : i64, tpu.core_type = #tpu.core_type<tc>, window_params = [{pipeline_mode = #tpu.pipeline_mode<synchronous>, transform_indices = @transform_0, window_bounds = array<i64: 8, 512>}, {pipeline_mode = #tpu.pipeline_mode<synchronous>, transform_indices = @transform_1, window_bounds = array<i64: 4, 128, 128>}, {pipeline_mode = #tpu.pipeline_mode<synchronous>, transform_indices = @transform_2, window_bounds = array<i64: 4, 1, 128>}, {pipeline_mode = #tpu.pipeline_mode<synchronous>, transform_indices = @transform_3, window_bounds = array<i64: 4, 8, 128>}]} {
    %c0 = arith.constant 0 : index
    %c0_0 = arith.constant 0 : index
    %0 = vector.load %arg1[%c0, %c0_0] : memref<8x512xbf16, #tpu.memory_space<vmem>>, vector<8x512xbf16>
    %1 = vector.extract_strided_slice %0 {offsets = [0, 0], sizes = [8, 128], strides = [1, 1]} : vector<8x512xbf16> to vector<8x128xbf16>
    %c0_1 = arith.constant 0 : index
    %c0_2 = arith.constant 0 : index
    %c0_3 = arith.constant 0 : index
    %2 = vector.load %arg2[%c0_1, %c0_2, %c0_3] : memref<4x128x128xbf16, #tpu.memory_space<vmem>>, vector<1x128x128xbf16>
    %3 = vector.shape_cast %2 : vector<1x128x128xbf16> to vector<128x128xbf16>
    %cst = arith.constant dense<0.000000e+00> : vector<8x128xf32>
    %4 = tpu.matmul %1, %3, %cst {dimension_numbers = #tpu.dot_dimension_numbers<[1], [0], [0], [1], [0, 0, 1, 1], [], []>} : vector<8x128xbf16>, vector<128x128xbf16>, vector<8x128xf32> -> vector<8x128xf32>
    %c0_4 = arith.constant 0 : index
    %c0_5 = arith.constant 0 : index
    %c0_6 = arith.constant 0 : index
    %5 = vector.load %arg3[%c0_4, %c0_5, %c0_6] : memref<4x1x128xbf16, #tpu.memory_space<vmem>>, vector<1x1x128xbf16>
    %6 = vector.shape_cast %5 : vector<1x1x128xbf16> to vector<1x128xbf16>
    %7 = arith.extf %6 : vector<1x128xbf16> to vector<1x128xf32>
    %8 = vector.broadcast %7 : vector<1x128xf32> to vector<8x128xf32>
    %9 = arith.addf %4, %8 : vector<8x128xf32>
    %10 = arith.truncf %9 : vector<8x128xf32> to vector<8x128xbf16>
    %c0_7 = arith.constant 0 : index
    %c0_8 = arith.constant 0 : index
    %c0_9 = arith.constant 0 : index
    %11 = vector.load %arg4[%c0_7, %c0_8, %c0_9] : memref<4x8x128xbf16, #tpu.memory_space<vmem>>, vector<1x8x128xbf16>
    %12 = vector.shape_cast %11 : vector<1x8x128xbf16> to vector<8x128xbf16>
    %13 = vector.shape_cast %10 : vector<8x128xbf16> to vector<1x8x128xbf16>
    tpu.vector_store %arg4[%c0_7, %c0_8, %c0_9], %13 {strides = array<i32>} : memref<4x8x128xbf16, #tpu.memory_space<vmem>>, vector<1x8x128xbf16>,
    %14 = vector.extract_strided_slice %0 {offsets = [0, 128], sizes = [8, 128], strides = [1, 1]} : vector<8x512xbf16> to vector<8x128xbf16>
    %c1 = arith.constant 1 : index
    %c0_10 = arith.constant 0 : index
    %c0_11 = arith.constant 0 : index
    %15 = vector.load %arg2[%c1, %c0_10, %c0_11] : memref<4x128x128xbf16, #tpu.memory_space<vmem>>, vector<1x128x128xbf16>
    %16 = vector.shape_cast %15 : vector<1x128x128xbf16> to vector<128x128xbf16>
    %cst_12 = arith.constant dense<0.000000e+00> : vector<8x128xf32>
    %17 = tpu.matmul %14, %16, %cst_12 {dimension_numbers = #tpu.dot_dimension_numbers<[1], [0], [0], [1], [0, 0, 1, 1], [], []>} : vector<8x128xbf16>, vector<128x128xbf16>, vector<8x128xf32> -> vector<8x128xf32>
    %c1_13 = arith.constant 1 : index
    %c0_14 = arith.constant 0 : index
    %c0_15 = arith.constant 0 : index
    %18 = vector.load %arg3[%c1_13, %c0_14, %c0_15] : memref<4x1x128xbf16, #tpu.memory_space<vmem>>, vector<1x1x128xbf16>
    %19 = vector.shape_cast %18 : vector<1x1x128xbf16> to vector<1x128xbf16>
    %20 = arith.extf %19 : vector<1x128xbf16> to vector<1x128xf32>
    %21 = vector.broadcast %20 : vector<1x128xf32> to vector<8x128xf32>
    %22 = arith.addf %17, %21 : vector<8x128xf32>
    %23 = arith.truncf %22 : vector<8x128xf32> to vector<8x128xbf16>
    %c1_16 = arith.constant 1 : index
    %c0_17 = arith.constant 0 : index
    %c0_18 = arith.constant 0 : index
    %24 = vector.load %arg4[%c1_16, %c0_17, %c0_18] : memref<4x8x128xbf16, #tpu.memory_space<vmem>>, vector<1x8x128xbf16>
    %25 = vector.shape_cast %24 : vector<1x8x128xbf16> to vector<8x128xbf16>
    %26 = vector.shape_cast %23 : vector<8x128xbf16> to vector<1x8x128xbf16>
    tpu.vector_store %arg4[%c1_16, %c0_17, %c0_18], %26 {strides = array<i32>} : memref<4x8x128xbf16, #tpu.memory_space<vmem>>, vector<1x8x128xbf16>,
    %27 = vector.extract_strided_slice %0 {offsets = [0, 256], sizes = [8, 128], strides = [1, 1]} : vector<8x512xbf16> to vector<8x128xbf16>
    %c2 = arith.constant 2 : index
    %c0_19 = arith.constant 0 : index
    %c0_20 = arith.constant 0 : index
    %28 = vector.load %arg2[%c2, %c0_19, %c0_20] : memref<4x128x128xbf16, #tpu.memory_space<vmem>>, vector<1x128x128xbf16>
    %29 = vector.shape_cast %28 : vector<1x128x128xbf16> to vector<128x128xbf16>
    %cst_21 = arith.constant dense<0.000000e+00> : vector<8x128xf32>
    %30 = tpu.matmul %27, %29, %cst_21 {dimension_numbers = #tpu.dot_dimension_numbers<[1], [0], [0], [1], [0, 0, 1, 1], [], []>} : vector<8x128xbf16>, vector<128x128xbf16>, vector<8x128xf32> -> vector<8x128xf32>
    %c2_22 = arith.constant 2 : index
    %c0_23 = arith.constant 0 : index
    %c0_24 = arith.constant 0 : index
    %31 = vector.load %arg3[%c2_22, %c0_23, %c0_24] : memref<4x1x128xbf16, #tpu.memory_space<vmem>>, vector<1x1x128xbf16>
    %32 = vector.shape_cast %31 : vector<1x1x128xbf16> to vector<1x128xbf16>
    %33 = arith.extf %32 : vector<1x128xbf16> to vector<1x128xf32>
    %34 = vector.broadcast %33 : vector<1x128xf32> to vector<8x128xf32>
    %35 = arith.addf %30, %34 : vector<8x128xf32>
    %36 = arith.truncf %35 : vector<8x128xf32> to vector<8x128xbf16>
    %c2_25 = arith.constant 2 : index
    %c0_26 = arith.constant 0 : index
    %c0_27 = arith.constant 0 : index
    %37 = vector.load %arg4[%c2_25, %c0_26, %c0_27] : memref<4x8x128xbf16, #tpu.memory_space<vmem>>, vector<1x8x128xbf16>
    %38 = vector.shape_cast %37 : vector<1x8x128xbf16> to vector<8x128xbf16>
    %39 = vector.shape_cast %36 : vector<8x128xbf16> to vector<1x8x128xbf16>
    tpu.vector_store %arg4[%c2_25, %c0_26, %c0_27], %39 {strides = array<i32>} : memref<4x8x128xbf16, #tpu.memory_space<vmem>>, vector<1x8x128xbf16>,
    %40 = vector.extract_strided_slice %0 {offsets = [0, 384], sizes = [8, 128], strides = [1, 1]} : vector<8x512xbf16> to vector<8x128xbf16>
    %c3 = arith.constant 3 : index
    %c0_28 = arith.constant 0 : index
    %c0_29 = arith.constant 0 : index
    %41 = vector.load %arg2[%c3, %c0_28, %c0_29] : memref<4x128x128xbf16, #tpu.memory_space<vmem>>, vector<1x128x128xbf16>
    %42 = vector.shape_cast %41 : vector<1x128x128xbf16> to vector<128x128xbf16>
    %cst_30 = arith.constant dense<0.000000e+00> : vector<8x128xf32>
    %43 = tpu.matmul %40, %42, %cst_30 {dimension_numbers = #tpu.dot_dimension_numbers<[1], [0], [0], [1], [0, 0, 1, 1], [], []>} : vector<8x128xbf16>, vector<128x128xbf16>, vector<8x128xf32> -> vector<8x128xf32>
    %c3_31 = arith.constant 3 : index
    %c0_32 = arith.constant 0 : index
    %c0_33 = arith.constant 0 : index
    %44 = vector.load %arg3[%c3_31, %c0_32, %c0_33] : memref<4x1x128xbf16, #tpu.memory_space<vmem>>, vector<1x1x128xbf16>
    %45 = vector.shape_cast %44 : vector<1x1x128xbf16> to vector<1x128xbf16>
    %46 = arith.extf %45 : vector<1x128xbf16> to vector<1x128xf32>
    %47 = vector.broadcast %46 : vector<1x128xf32> to vector<8x128xf32>
    %48 = arith.addf %43, %47 : vector<8x128xf32>
    %49 = arith.truncf %48 : vector<8x128xf32> to vector<8x128xbf16>
    %c3_34 = arith.constant 3 : index
    %c0_35 = arith.constant 0 : index
    %c0_36 = arith.constant 0 : index
    %50 = vector.load %arg4[%c3_34, %c0_35, %c0_36] : memref<4x8x128xbf16, #tpu.memory_space<vmem>>, vector<1x8x128xbf16>
    %51 = vector.shape_cast %50 : vector<1x8x128xbf16> to vector<8x128xbf16>
    %52 = vector.shape_cast %49 : vector<8x128xbf16> to vector<1x8x128xbf16>
    tpu.vector_store %arg4[%c3_34, %c0_35, %c0_36], %52 {strides = array<i32>} : memref<4x8x128xbf16, #tpu.memory_space<vmem>>, vector<1x8x128xbf16>,
    return
  }
  func.func @transform_0(%arg0: i32) -> (i32, i32) {
    %c0_i32 = arith.constant 0 : i32
    %c0_i32_0 = arith.constant 0 : i32
    %c0_i32_1 = arith.constant 0 : i32
    return %c0_i32, %c0_i32_0 : i32, i32
  }
  func.func @transform_1(%arg0: i32) -> (i32, i32, i32) {
    %c0_i32 = arith.constant 0 : i32
    %c0_i32_0 = arith.constant 0 : i32
    %c0_i32_1 = arith.constant 0 : i32
    %c0_i32_2 = arith.constant 0 : i32
    return %c0_i32, %c0_i32_0, %c0_i32_1 : i32, i32, i32
  }
  func.func @transform_2(%arg0: i32) -> (i32, i32, i32) {
    %c0_i32 = arith.constant 0 : i32
    %c0_i32_0 = arith.constant 0 : i32
    %c0_i32_1 = arith.constant 0 : i32
    %c0_i32_2 = arith.constant 0 : i32
    return %c0_i32, %c0_i32_0, %c0_i32_1 : i32, i32, i32
  }
  func.func @transform_3(%arg0: i32) -> (i32, i32, i32) {
    %c0_i32 = arith.constant 0 : i32
    %c0_i32_0 = arith.constant 0 : i32
    %c0_i32_1 = arith.constant 0 : i32
    %c0_i32_2 = arith.constant 0 : i32
    return %c0_i32, %c0_i32_0, %c0_i32_1 : i32, i32, i32
  }
}

</mosaic_0001>

<llo_original>
// kernel: tpu_custom_call.1
$region0: #{tpu_custom_call.1}
  #allocation0 [shape = 'u32[]', space=smem, size = 0x4, offset = 0x4, fixed_abs, tag = 'smem constant byte address 0x4 - core index']
  #allocation1 [shape = 'u32[144,128]{1,0:T(1,128)}', space=vmem, size = 0x12000, scoped, tag = 'internal scratch']
  %s0 = inlined_call_operand.hbm [shape: bf16[8,512], index: 0, kind: input, shape index: {}]
  %s1 = inlined_call_operand.hbm [shape: bf16[4,128,128], index: 1, kind: input, shape index: {}]
  %s2 = inlined_call_operand.vmem [shape: bf16[4,1,128], index: 2, kind: input, shape index: {}]
  %s3 = inlined_call_operand.hbm [shape: bf16[4,8,128], index: 3, kind: output, shape index: {}]
  %s4 = sld [smem:[#allocation0]]
  $region30: #{tpu_custom_call.1} parent=0
    _
  %s6 = ssub.s32 1, %s4
  %s7 = scalar_select 0, %s6, %s4
  $region1: #{tpu_custom_call.1} parent=0
    #allocation2 [shape = 'u8[8192]{0}', space=vmem, size = 0x2000, scoped, tag = 'input window, operand 0, single buffered']
    #allocation3 [shape = 's32[1]{0}', space=sflag, size = 0x4, scoped, tag = 'scoped memory for tpu_custom_call.1']
    #allocation4 [shape = 's32[1]{0}', space=sflag, size = 0x4, scoped, tag = 'scoped memory for tpu_custom_call.1']
    #allocation5 [shape = 'u8[131072]{0}', space=vmem, size = 0x20000, scoped, tag = 'input window, operand 1, single buffered']
    #allocation6 [shape = 's32[1]{0}', space=sflag, size = 0x4, scoped, tag = 'scoped memory for tpu_custom_call.1']
    #allocation7 [shape = 'u8[8192]{0}', space=vmem, size = 0x2000, scoped, tag = 'output window, operand 0, single buffered']
    %8 = vsyncpa [#allocation3], 0
    %9 = vsyncpa [#allocation6], 0
    %10 = vsyncpa [#allocation4], 0
    // Predicated region
    $region2: #{tpu_custom_call.1} parent=1 // pred_check
      _
    $region3: #{tpu_custom_call.1} parent=1 // pred_check_branch
      %12 = sbr.rel (0) target = $region5
    $region4: #{tpu_custom_call.1} parent=1 // pred_region
      %s14 = ssub.s32 256, 256
      %15 = vsyncadd [#allocation3], %s14
      %s17 = sshll.u32 [#allocation2], 4
      %s18 = int_to_ptr.vmem [resolvable:$true] %s17
      %20 = dma.hbm_to_vmem [thread:$0]  %s0, 256, %s18, [#allocation3]
    $region5: #{tpu_custom_call.1} parent=1 // pred_fallthru
      _
    // Predicated region
    $region6: #{tpu_custom_call.1} parent=1 // pred_check
      _
    $region7: #{tpu_custom_call.1} parent=1 // pred_check_branch
      %22 = sbr.rel (0) target = $region9
    $region8: #{tpu_custom_call.1} parent=1 // pred_region
      %s24 = ssub.s32 4096, 4096
      %25 = vsyncadd [#allocation6], %s24
      %s26 = sshll.u32 [#allocation5], 4
      %s27 = int_to_ptr.vmem [resolvable:$true] %s26
      %32 = dma.hbm_to_vmem [thread:$0]  %s1, 4096, %s27, [#allocation6], 64, 64, 4
    $region9: #{tpu_custom_call.1} parent=1 // pred_fallthru
      _
    // Predicated region
    $region10: #{tpu_custom_call.1} parent=1 // pred_check
      _
    $region11: #{tpu_custom_call.1} parent=1 // pred_check_branch
      %34 = sbr.rel (0) target = $region13
    $region12: #{tpu_custom_call.1} parent=1 // pred_region
      _
    $region13: #{tpu_custom_call.1} parent=1 // pred_fallthru
      _
    // Predicated region
    $region14: #{tpu_custom_call.1} parent=1 // pred_check
      _
    $region15: #{tpu_custom_call.1} parent=1 // pred_check_branch
      %36 = sbr.rel (0) target = $region17
    $region16: #{tpu_custom_call.1} parent=1 // pred_region
      %37 = dma.done [#allocation3], 256
    $region17: #{tpu_custom_call.1} parent=1 // pred_fallthru
      _
    // Predicated region
    $region18: #{tpu_custom_call.1} parent=1 // pred_check
      _
    $region19: #{tpu_custom_call.1} parent=1 // pred_check_branch
      %39 = sbr.rel (0) target = $region21
    $region20: #{tpu_custom_call.1} parent=1 // pred_region
      %40 = dma.done [#allocation6], 4096
    $region21: #{tpu_custom_call.1} parent=1 // pred_fallthru
      _
    %v42 = vld [vmem:[#allocation2] sm:$0xff]
    %v43 = vld [vmem:[#allocation2 + $0x8] sm:$0xff]
    %v44 = vld [vmem:[#allocation5] sm:$0xf]
    %v45 = vld [vmem:[#allocation5 + $0x4] sm:$0xf]
    %v46 = vld [vmem:[#allocation5 + $0x8] sm:$0xf]
    %v47 = vld [vmem:[#allocation5 + $0xc] sm:$0xf]
    %v48 = vld [vmem:[#allocation5 + $0x10] sm:$0xf]
    %v49 = vld [vmem:[#allocation5 + $0x14] sm:$0xf]
    %v50 = vld [vmem:[#allocation5 + $0x18] sm:$0xf]
    %v51 = vld [vmem:[#allocation5 + $0x1c] sm:$0xf]
    %v52 = vld [vmem:[#allocation5 + $0x20] sm:$0xf]
    %v53 = vld [vmem:[#allocation5 + $0x24] sm:$0xf]
    %v54 = vld [vmem:[#allocation5 + $0x28] sm:$0xf]
    %v55 = vld [vmem:[#allocation5 + $0x2c] sm:$0xf]
    %v56 = vld [vmem:[#allocation5 + $0x30] sm:$0xf]
    %v57 = vld [vmem:[#allocation5 + $0x34] sm:$0xf]
    %v58 = vld [vmem:[#allocation5 + $0x38] sm:$0xf]
    %v59 = vld [vmem:[#allocation5 + $0x3c] sm:$0xf]
    %v60 = vld [vmem:[%s2] sm:$0x1]
    %v61 = vunpack.c.l.bf16 %v60
    %v62 = vlaneseq
    %v63 = vshrl.u32 %v62, 7
    %v64 = vsub.s32 0, %v63
    %v65 = vrot.slane %v61, %v64
    %v82 = vunpack.c.l.b16 %v44
    %v83 = vunpack.c.l.b16 %v45
    %v84 = vunpack.c.l.b16 %v46
    %v85 = vunpack.c.l.b16 %v47
    %v86 = vunpack.c.l.b16 %v48
    %v87 = vunpack.c.l.b16 %v49
    %v88 = vunpack.c.l.b16 %v50
    %v89 = vunpack.c.l.b16 %v51
    %v90 = vunpack.c.l.b16 %v52
    %v91 = vunpack.c.l.b16 %v53
    %v92 = vunpack.c.l.b16 %v54
    %v93 = vunpack.c.l.b16 %v55
    %v94 = vunpack.c.l.b16 %v56
    %v95 = vunpack.c.l.b16 %v57
    %v96 = vunpack.c.l.b16 %v58
    %v97 = vunpack.c.l.b16 %v59
    %v98 = vpack.c.b16 %v83, %v82
    %v99 = vpack.c.b16 %v85, %v84
    %v100 = vpack.c.b16 %v87, %v86
    %v101 = vpack.c.b16 %v89, %v88
    %v102 = vpack.c.b16 %v91, %v90
    %v103 = vpack.c.b16 %v93, %v92
    %v104 = vpack.c.b16 %v95, %v94
    %v105 = vpack.c.b16 %v97, %v96
    %114 = vmatprep.subr.bf16.mxu0 0
    %115 = vmatpush1.bf16.msra.mxu0 %v98
    %116 = vmatprep.subr.bf16.mxu0 0
    %117 = vmatpush1.bf16.msra.mxu0 %v99
    %118 = vmatprep.subr.bf16.mxu0 0
    %119 = vmatpush1.bf16.msra.mxu0 %v100
    %120 = vmatprep.subr.bf16.mxu0 0
    %121 = vmatpush1.bf16.msra.mxu0 %v101
    %122 = vmatprep.subr.bf16.mxu0 0
    %123 = vmatpush1.bf16.msra.mxu0 %v102
    %124 = vmatprep.subr.bf16.mxu0 0
    %125 = vmatpush1.bf16.msra.mxu0 %v103
    %126 = vmatprep.subr.bf16.mxu0 0
    %127 = vmatpush1.bf16.msra.mxu0 %v104
    %128 = vmatprep.subr.bf16.mxu0 0
    %129 = vmatpush1.bf16.msra.mxu0 %v105
    %130 = vmatprep.subr.bf16.mxu0 0
    %131 = vmatpush1.bf16.msra.mxu0 0
    %132 = vmatprep.subr.bf16.mxu0 0
    %133 = vmatpush1.bf16.msra.mxu0 0
    %134 = vmatprep.subr.bf16.mxu0 0
    %135 = vmatpush1.bf16.msra.mxu0 0
    %136 = vmatprep.subr.bf16.mxu0 0
    %137 = vmatpush1.bf16.msra.mxu0 0
    %138 = vmatprep.subr.bf16.mxu0 0
    %139 = vmatpush1.bf16.msra.mxu0 0
    %140 = vmatprep.subr.bf16.mxu0 0
    %141 = vmatpush1.bf16.msra.mxu0 0
    %142 = vmatprep.subr.bf16.mxu0 0
    %143 = vmatpush1.bf16.msra.mxu0 0
    %144 = vmatprep.subr.bf16.mxu0 0
    %145 = vmatpush1.bf16.msra.mxu0 0
    %146 = vmatprep.mubr.bf16.mxu0 0
    %147 = vmatmul.mubr.bf16.gmra.mrb[0].mxu0 %v42
    %v148 = vpop.f32.mrb[0].mxu0
    %v149 = vadd.f32 %v65, %v148
    %v150 = vpop.f32.mrb[0].mxu0
    %v151 = vpop.f32.mrb[0].mxu0
    %v152 = vpop.f32.mrb[0].mxu0
    %153 = vdwg.mxu0
    %v154 = vpack.c.bf16 %v149, %v149
    %155 = vst [vmem:[#allocation7] sm:$0xf] %v154
    %s156 = scalar_lea.vmem [#allocation5], 64
    %v157 = vld [vmem:[%s156] sm:$0xf]
    %v158 = vld [vmem:[%s156 + $0x4] sm:$0xf]
    %v159 = vld [vmem:[%s156 + $0x8] sm:$0xf]
    %v160 = vld [vmem:[%s156 + $0xc] sm:$0xf]
    %v161 = vld [vmem:[%s156 + $0x10] sm:$0xf]
    %v162 = vld [vmem:[%s156 + $0x14] sm:$0xf]
    %v163 = vld [vmem:[%s156 + $0x18] sm:$0xf]
    %v164 = vld [vmem:[%s156 + $0x1c] sm:$0xf]
    %v165 = vld [vmem:[%s156 + $0x20] sm:$0xf]
    %v166 = vld [vmem:[%s156 + $0x24] sm:$0xf]
    %v167 = vld [vmem:[%s156 + $0x28] sm:$0xf]
    %v168 = vld [vmem:[%s156 + $0x2c] sm:$0xf]
    %v169 = vld [vmem:[%s156 + $0x30] sm:$0xf]
    %v170 = vld [vmem:[%s156 + $0x34] sm:$0xf]
    %v171 = vld [vmem:[%s156 + $0x38] sm:$0xf]
    %v172 = vld [vmem:[%s156 + $0x3c] sm:$0xf]
    %s173 = scalar_lea.vmem %s2, 1
    %v174 = vld [vmem:[%s173] sm:$0x1]
    %v175 = vunpack.c.l.bf16 %v174
    %v176 = vlaneseq
    %v177 = vshrl.u32 %v176, 7
    %v178 = vsub.s32 0, %v177
    %v179 = vrot.slane %v175, %v178
    %v181 = vunpack.c.h.b16 %v42
    %v182 = vpack.c.b16 %v181, %v181
    %v200 = vunpack.c.l.b16 %v157
    %v201 = vunpack.c.l.b16 %v158
    %v202 = vunpack.c.l.b16 %v159
    %v203 = vunpack.c.l.b16 %v160
    %v204 = vunpack.c.l.b16 %v161
    %v205 = vunpack.c.l.b16 %v162
    %v206 = vunpack.c.l.b16 %v163
    %v207 = vunpack.c.l.b16 %v164
    %v208 = vunpack.c.l.b16 %v165
    %v209 = vunpack.c.l.b16 %v166
    %v210 = vunpack.c.l.b16 %v167
    %v211 = vunpack.c.l.b16 %v168
    %v212 = vunpack.c.l.b16 %v169
    %v213 = vunpack.c.l.b16 %v170
    %v214 = vunpack.c.l.b16 %v171
    %v215 = vunpack.c.l.b16 %v172
    %v216 = vpack.c.b16 %v201, %v200
    %v217 = vpack.c.b16 %v203, %v202
    %v218 = vpack.c.b16 %v205, %v204
    %v219 = vpack.c.b16 %v207, %v206
    %v220 = vpack.c.b16 %v209, %v208
    %v221 = vpack.c.b16 %v211, %v210
    %v222 = vpack.c.b16 %v213, %v212
    %v223 = vpack.c.b16 %v215, %v214
    %232 = vmatprep.subr.bf16.mxu0 0
    %233 = vmatpush1.bf16.msra.mxu0 %v216
    %234 = vmatprep.subr.bf16.mxu0 0
    %235 = vmatpush1.bf16.msra.mxu0 %v217
    %236 = vmatprep.subr.bf16.mxu0 0
    %237 = vmatpush1.bf16.msra.mxu0 %v218
    %238 = vmatprep.subr.bf16.mxu0 0
    %239 = vmatpush1.bf16.msra.mxu0 %v219
    %240 = vmatprep.subr.bf16.mxu0 0
    %241 = vmatpush1.bf16.msra.mxu0 %v220
    %242 = vmatprep.subr.bf16.mxu0 0
    %243 = vmatpush1.bf16.msra.mxu0 %v221
    %244 = vmatprep.subr.bf16.mxu0 0
    %245 = vmatpush1.bf16.msra.mxu0 %v222
    %246 = vmatprep.subr.bf16.mxu0 0
    %247 = vmatpush1.bf16.msra.mxu0 %v223
    %248 = vmatprep.subr.bf16.mxu0 0
    %249 = vmatpush1.bf16.msra.mxu0 0
    %250 = vmatprep.subr.bf16.mxu0 0
    %251 = vmatpush1.bf16.msra.mxu0 0
    %252 = vmatprep.subr.bf16.mxu0 0
    %253 = vmatpush1.bf16.msra.mxu0 0
    %254 = vmatprep.subr.bf16.mxu0 0
    %255 = vmatpush1.bf16.msra.mxu0 0
    %256 = vmatprep.subr.bf16.mxu0 0
    %257 = vmatpush1.bf16.msra.mxu0 0
    %258 = vmatprep.subr.bf16.mxu0 0
    %259 = vmatpush1.bf16.msra.mxu0 0
    %260 = vmatprep.subr.bf16.mxu0 0
    %261 = vmatpush1.bf16.msra.mxu0 0
    %262 = vmatprep.subr.bf16.mxu0 0
    %263 = vmatpush1.bf16.msra.mxu0 0
    %264 = vmatprep.mubr.bf16.mxu0 0
    %265 = vmatmul.mubr.bf16.gmra.mrb[0].mxu0 %v182
    %v266 = vpop.f32.mrb[0].mxu0
    %v267 = vadd.f32 %v179, %v266
    %v268 = vpop.f32.mrb[0].mxu0
    %v269 = vpop.f32.mrb[0].mxu0
    %v270 = vpop.f32.mrb[0].mxu0
    %271 = vdwg.mxu0
    %v272 = vpack.c.bf16 %v267, %v267
    %s273 = scalar_lea.vmem [#allocation7], 4
    %274 = vst [vmem:[%s273] sm:$0xf] %v272
    %s275 = scalar_lea.vmem [#allocation5], 128
    %v276 = vld [vmem:[%s275] sm:$0xf]
    %v277 = vld [vmem:[%s275 + $0x4] sm:$0xf]
    %v278 = vld [vmem:[%s275 + $0x8] sm:$0xf]
    %v279 = vld [vmem:[%s275 + $0xc] sm:$0xf]
    %v280 = vld [vmem:[%s275 + $0x10] sm:$0xf]
    %v281 = vld [vmem:[%s275 + $0x14] sm:$0xf]
    %v282 = vld [vmem:[%s275 + $0x18] sm:$0xf]
    %v283 = vld [vmem:[%s275 + $0x1c] sm:$0xf]
    %v284 = vld [vmem:[%s275 + $0x20] sm:$0xf]
    %v285 = vld [vmem:[%s275 + $0x24] sm:$0xf]
    %v286 = vld [vmem:[%s275 + $0x28] sm:$0xf]
    %v287 = vld [vmem:[%s275 + $0x2c] sm:$0xf]
    %v288 = vld [vmem:[%s275 + $0x30] sm:$0xf]
    %v289 = vld [vmem:[%s275 + $0x34] sm:$0xf]
    %v290 = vld [vmem:[%s275 + $0x38] sm:$0xf]
    %v291 = vld [vmem:[%s275 + $0x3c] sm:$0xf]
    %s292 = scalar_lea.vmem %s2, 2
    %v293 = vld [vmem:[%s292] sm:$0x1]
    %v294 = vunpack.c.l.bf16 %v293
    %v295 = vlaneseq
    %v296 = vshrl.u32 %v295, 7
    %v297 = vsub.s32 0, %v296
    %v298 = vrot.slane %v294, %v297
    %v315 = vunpack.c.l.b16 %v276
    %v316 = vunpack.c.l.b16 %v277
    %v317 = vunpack.c.l.b16 %v278
    %v318 = vunpack.c.l.b16 %v279
    %v319 = vunpack.c.l.b16 %v280
    %v320 = vunpack.c.l.b16 %v281
    %v321 = vunpack.c.l.b16 %v282
    %v322 = vunpack.c.l.b16 %v283
    %v323 = vunpack.c.l.b16 %v284
    %v324 = vunpack.c.l.b16 %v285
    %v325 = vunpack.c.l.b16 %v286
    %v326 = vunpack.c.l.b16 %v287
    %v327 = vunpack.c.l.b16 %v288
    %v328 = vunpack.c.l.b16 %v289
    %v329 = vunpack.c.l.b16 %v290
    %v330 = vunpack.c.l.b16 %v291
    %v331 = vpack.c.b16 %v316, %v315
    %v332 = vpack.c.b16 %v318, %v317
    %v333 = vpack.c.b16 %v320, %v319
    %v334 = vpack.c.b16 %v322, %v321
    %v335 = vpack.c.b16 %v324, %v323
    %v336 = vpack.c.b16 %v326, %v325
    %v337 = vpack.c.b16 %v328, %v327
    %v338 = vpack.c.b16 %v330, %v329
    %347 = vmatprep.subr.bf16.mxu0 0
    %348 = vmatpush1.bf16.msra.mxu0 %v331
    %349 = vmatprep.subr.bf16.mxu0 0
    %350 = vmatpush1.bf16.msra.mxu0 %v332
    %351 = vmatprep.subr.bf16.mxu0 0
    %352 = vmatpush1.bf16.msra.mxu0 %v333
    %353 = vmatprep.subr.bf16.mxu0 0
    %354 = vmatpush1.bf16.msra.mxu0 %v334
    %355 = vmatprep.subr.bf16.mxu0 0
    %356 = vmatpush1.bf16.msra.mxu0 %v335
    %357 = vmatprep.subr.bf16.mxu0 0
    %358 = vmatpush1.bf16.msra.mxu0 %v336
    %359 = vmatprep.subr.bf16.mxu0 0
    %360 = vmatpush1.bf16.msra.mxu0 %v337
    %361 = vmatprep.subr.bf16.mxu0 0
    %362 = vmatpush1.bf16.msra.mxu0 %v338
    %363 = vmatprep.subr.bf16.mxu0 0
    %364 = vmatpush1.bf16.msra.mxu0 0
    %365 = vmatprep.subr.bf16.mxu0 0
    %366 = vmatpush1.bf16.msra.mxu0 0
    %367 = vmatprep.subr.bf16.mxu0 0
    %368 = vmatpush1.bf16.msra.mxu0 0
    %369 = vmatprep.subr.bf16.mxu0 0
    %370 = vmatpush1.bf16.msra.mxu0 0
    %371 = vmatprep.subr.bf16.mxu0 0
    %372 = vmatpush1.bf16.msra.mxu0 0
    %373 = vmatprep.subr.bf16.mxu0 0
    %374 = vmatpush1.bf16.msra.mxu0 0
    %375 = vmatprep.subr.bf16.mxu0 0
    %376 = vmatpush1.bf16.msra.mxu0 0
    %377 = vmatprep.subr.bf16.mxu0 0
    %378 = vmatpush1.bf16.msra.mxu0 0
    %379 = vmatprep.mubr.bf16.mxu0 0
    %380 = vmatmul.mubr.bf16.gmra.mrb[0].mxu0 %v43
    %v381 = vpop.f32.mrb[0].mxu0
    %v382 = vadd.f32 %v298, %v381
    %v383 = vpop.f32.mrb[0].mxu0
    %v384 = vpop.f32.mrb[0].mxu0
    %v385 = vpop.f32.mrb[0].mxu0
    %386 = vdwg.mxu0
    %v387 = vpack.c.bf16 %v382, %v382
    %s388 = scalar_lea.vmem [#allocation7], 8
    %389 = vst [vmem:[%s388] sm:$0xf] %v387
    %s390 = scalar_lea.vmem [#allocation5], 192
    %v391 = vld [vmem:[%s390] sm:$0xf]
    %v392 = vld [vmem:[%s390 + $0x4] sm:$0xf]
    %v393 = vld [vmem:[%s390 + $0x8] sm:$0xf]
    %v394 = vld [vmem:[%s390 + $0xc] sm:$0xf]
    %v395 = vld [vmem:[%s390 + $0x10] sm:$0xf]
    %v396 = vld [vmem:[%s390 + $0x14] sm:$0xf]
    %v397 = vld [vmem:[%s390 + $0x18] sm:$0xf]
    %v398 = vld [vmem:[%s390 + $0x1c] sm:$0xf]
    %v399 = vld [vmem:[%s390 + $0x20] sm:$0xf]
    %v400 = vld [vmem:[%s390 + $0x24] sm:$0xf]
    %v401 = vld [vmem:[%s390 + $0x28] sm:$0xf]
    %v402 = vld [vmem:[%s390 + $0x2c] sm:$0xf]
    %v403 = vld [vmem:[%s390 + $0x30] sm:$0xf]
    %v404 = vld [vmem:[%s390 + $0x34] sm:$0xf]
    %v405 = vld [vmem:[%s390 + $0x38] sm:$0xf]
    %v406 = vld [vmem:[%s390 + $0x3c] sm:$0xf]
    %s407 = scalar_lea.vmem %s2, 3
    %v408 = vld [vmem:[%s407] sm:$0x1]
    %v409 = vunpack.c.l.bf16 %v408
    %v410 = vlaneseq
    %v411 = vshrl.u32 %v410, 7
    %v412 = vsub.s32 0, %v411
    %v413 = vrot.slane %v409, %v412
    %v415 = vunpack.c.h.b16 %v43
    %v416 = vpack.c.b16 %v415, %v415
    %v434 = vunpack.c.l.b16 %v391
    %v435 = vunpack.c.l.b16 %v392
    %v436 = vunpack.c.l.b16 %v393
    %v437 = vunpack.c.l.b16 %v394
    %v438 = vunpack.c.l.b16 %v395
    %v439 = vunpack.c.l.b16 %v396
    %v440 = vunpack.c.l.b16 %v397
    %v441 = vunpack.c.l.b16 %v398
    %v442 = vunpack.c.l.b16 %v399
    %v443 = vunpack.c.l.b16 %v400
    %v444 = vunpack.c.l.b16 %v401
    %v445 = vunpack.c.l.b16 %v402
    %v446 = vunpack.c.l.b16 %v403
    %v447 = vunpack.c.l.b16 %v404
    %v448 = vunpack.c.l.b16 %v405
    %v449 = vunpack.c.l.b16 %v406
    %v450 = vpack.c.b16 %v435, %v434
    %v451 = vpack.c.b16 %v437, %v436
    %v452 = vpack.c.b16 %v439, %v438
    %v453 = vpack.c.b16 %v441, %v440
    %v454 = vpack.c.b16 %v443, %v442
    %v455 = vpack.c.b16 %v445, %v444
    %v456 = vpack.c.b16 %v447, %v446
    %v457 = vpack.c.b16 %v449, %v448
    %466 = vmatprep.subr.bf16.mxu0 0
    %467 = vmatpush1.bf16.msra.mxu0 %v450
    %468 = vmatprep.subr.bf16.mxu0 0
    %469 = vmatpush1.bf16.msra.mxu0 %v451
    %470 = vmatprep.subr.bf16.mxu0 0
    %471 = vmatpush1.bf16.msra.mxu0 %v452
    %472 = vmatprep.subr.bf16.mxu0 0
    %473 = vmatpush1.bf16.msra.mxu0 %v453
    %474 = vmatprep.subr.bf16.mxu0 0
    %475 = vmatpush1.bf16.msra.mxu0 %v454
    %476 = vmatprep.subr.bf16.mxu0 0
    %477 = vmatpush1.bf16.msra.mxu0 %v455
    %478 = vmatprep.subr.bf16.mxu0 0
    %479 = vmatpush1.bf16.msra.mxu0 %v456
    %480 = vmatprep.subr.bf16.mxu0 0
    %481 = vmatpush1.bf16.msra.mxu0 %v457
    %482 = vmatprep.subr.bf16.mxu0 0
    %483 = vmatpush1.bf16.msra.mxu0 0
    %484 = vmatprep.subr.bf16.mxu0 0
    %485 = vmatpush1.bf16.msra.mxu0 0
    %486 = vmatprep.subr.bf16.mxu0 0
    %487 = vmatpush1.bf16.msra.mxu0 0
    %488 = vmatprep.subr.bf16.mxu0 0
    %489 = vmatpush1.bf16.msra.mxu0 0
    %490 = vmatprep.subr.bf16.mxu0 0
    %491 = vmatpush1.bf16.msra.mxu0 0
    %492 = vmatprep.subr.bf16.mxu0 0
    %493 = vmatpush1.bf16.msra.mxu0 0
    %494 = vmatprep.subr.bf16.mxu0 0
    %495 = vmatpush1.bf16.msra.mxu0 0
    %496 = vmatprep.subr.bf16.mxu0 0
    %497 = vmatpush1.bf16.msra.mxu0 0
    %498 = vmatprep.mubr.bf16.mxu0 0
    %499 = vmatmul.mubr.bf16.gmra.mrb[0].mxu0 %v416
    %v500 = vpop.f32.mrb[0].mxu0
    %v501 = vadd.f32 %v413, %v500
    %v502 = vpop.f32.mrb[0].mxu0
    %v503 = vpop.f32.mrb[0].mxu0
    %v504 = vpop.f32.mrb[0].mxu0
    %505 = vdwg.mxu0
    %v506 = vpack.c.bf16 %v501, %v501
    %s507 = scalar_lea.vmem [#allocation7], 12
    %508 = vst [vmem:[%s507] sm:$0xf] %v506
    // Predicated region
    $region22: #{tpu_custom_call.1} parent=1 // pred_check
      _
    $region23: #{tpu_custom_call.1} parent=1 // pred_check_branch
      %510 = sbr.rel (0) target = $region25
    $region24: #{tpu_custom_call.1} parent=1 // pred_region
      %s512 = ssub.s32 256, 256
      %513 = vsyncadd [#allocation4], %s512
      %s514 = sshll.u32 [#allocation7], 4
      %s515 = int_to_ptr.vmem [resolvable:$true] %s514
      %520 = dma.vmem_to_hbm [thread:$0]  %s515, 256, %s3, [#allocation4], 64, 64, 4
    $region25: #{tpu_custom_call.1} parent=1 // pred_fallthru
      _
    // Predicated region
    $region26: #{tpu_custom_call.1} parent=1 // pred_check
      _
    $region27: #{tpu_custom_call.1} parent=1 // pred_check_branch
      %522 = sbr.rel (0) target = $region29
    $region28: #{tpu_custom_call.1} parent=1 // pred_region
      %523 = dma.done [#allocation4], 256
    $region29: #{tpu_custom_call.1} parent=1 // pred_fallthru
      _
    %524 = vsyncpa [#allocation3], 1
    %525 = vsyncpa [#allocation6], 1
    %526 = vsyncpa [#allocation4], 1

</llo_original>
